<compile_context>
chip_gen: v6e
topology: v6e:2x2x1
jax: 0.10.0
libtpu: 0.0.40
codegen_flags: <defaults>
</compile_context>

<pallas_src>
import functools

import jax
import jax.numpy as jnp
from jax.experimental import pallas as pl
from jax.experimental.pallas import tpu as pltpu

LANE = 128
BF16_SUBLANES = 16   # bf16 packs 16 sublanes per vreg


def _round_up(x, m):
    return (x + m - 1) // m * m


def _pad2(arr, rows, cols, dtype):
    r, c = arr.shape
    return jnp.zeros((rows, cols), dtype).at[:r, :c].set(arr.astype(dtype))


# ---------------------------------------------------------------------------
# Fused Pallas kernel: 3x (A_hat @ (h @ W) + b, relu) -> P @ h -> @ W_lin + b_lin
# ---------------------------------------------------------------------------
def gcn_fused_kernel(a_ref, p_ref, x_ref,
                     w1_ref, b1_ref, w2_ref, b2_ref, w3_ref, b3_ref,
                     wl_ref, bl_ref,
                     o_ref):
    cdt = a_ref.dtype  # bf16 compute dtype for MXU operands
    a = a_ref[...]

    def conv(h, w_ref, b_ref, relu):
        # hW computed once (small K), then the dominant matmul A_hat @ hW with K = N_pad.
        # h stays f32 between layers; cast to bf16 only at the MXU operand.
        hw = jnp.dot(h.astype(cdt), w_ref[...], preferred_element_type=jnp.float32)
        out = jnp.dot(a, hw.astype(cdt), preferred_element_type=jnp.float32)
        out = out + b_ref[...]                    # f32 epilogue
        if relu:
            out = jnp.maximum(out, 0.0)
        return out                                # f32, lives in vregs

    h = conv(x_ref[...], w1_ref, b1_ref, True)
    h = conv(h, w2_ref, b2_ref, True)
    h = conv(h, w3_ref, b3_ref, False)

    # global mean pool (P is the per-graph averaging matrix) + linear head
    pooled = jnp.dot(p_ref[...], h.astype(cdt), preferred_element_type=jnp.float32)
    out = jnp.dot(pooled.astype(cdt), wl_ref[...],
                  preferred_element_type=jnp.float32) + bl_ref[...]
    # dropout(p=0.5, training=False) -> identity at inference
    o_ref[...] = out.astype(o_ref.dtype)


# ---------------------------------------------------------------------------
# One-time preparation: pad + cast every static operand (A_hat, P, weights, biases)
# ---------------------------------------------------------------------------
def prepare_gcn(params, a_hat, pool_mat, num_node_features, num_graphs, num_classes):
    n = a_hat.shape[0]
    hid = params["w1"].shape[1]

    n_p = _round_up(n, LANE)            # node dim is also a lane dim (A_hat cols, P cols)
    f_p = _round_up(num_node_features, LANE)
    h_p = _round_up(hid, LANE)
    c_p = _round_up(num_classes, LANE)
    g_p = _round_up(num_graphs, BF16_SUBLANES)

    bf = jnp.bfloat16
    return {
        "a_hat": _pad2(a_hat, n_p, n_p, bf),
        "pool": _pad2(pool_mat, g_p, n_p, bf),
        "w1": _pad2(params["w1"], f_p, h_p, bf),
        "w2": _pad2(params["w2"], h_p, h_p, bf),
        "w3": _pad2(params["w3"], h_p, h_p, bf),
        "w_lin": _pad2(params["w_lin"], h_p, c_p, bf),
        "b1": _pad2(params["b1"], 1, h_p, jnp.float32),
        "b2": _pad2(params["b2"], 1, h_p, jnp.float32),
        "b3": _pad2(params["b3"], 1, h_p, jnp.float32),
        "b_lin": _pad2(params["b_lin"], 1, c_p, jnp.float32),
    }


# ---------------------------------------------------------------------------
# Per-call forward: pad x (single cheap op), one pallas_call, slice the result
# ---------------------------------------------------------------------------
@functools.partial(jax.jit, static_argnames=("num_graphs", "num_classes"))
def gcn_forward(prep, x, num_graphs, num_classes):
    n_p = prep["a_hat"].shape[0]
    f_p = prep["w1"].shape[0]
    h_p = prep["w1"].shape[1]
    c_p = prep["w_lin"].shape[1]
    g_p = prep["pool"].shape[0]

    x_p = _pad2(x, n_p, f_p, jnp.bfloat16)

    # advisory cost estimate (padded dims; all Python ints)
    flops = (2 * n_p * f_p * h_p + 2 * n_p * n_p * h_p            # layer 1
             + 2 * (2 * n_p * h_p * h_p + 2 * n_p * n_p * h_p)    # layers 2, 3
             + 2 * g_p * n_p * h_p + 2 * g_p * h_p * c_p)         # pool + linear
    bytes_in = (2 * (n_p * n_p + g_p * n_p + n_p * f_p
                     + f_p * h_p + 2 * h_p * h_p + h_p * c_p)     # bf16 operands
                + 4 * (3 * h_p + c_p))                            # f32 biases
    bytes_out = 4 * g_p * c_p

    vmem_specs = [pl.BlockSpec(memory_space=pltpu.MemorySpace.VMEM) for _ in range(11)]
    out_p = pl.pallas_call(
        gcn_fused_kernel,
        out_shape=jax.ShapeDtypeStruct((g_p, c_p), jnp.float32),
        in_specs=vmem_specs,
        out_specs=pl.BlockSpec(memory_space=pltpu.MemorySpace.VMEM),
        cost_estimate=pl.CostEstimate(flops=flops, transcendentals=0,
                                      bytes_accessed=bytes_in + bytes_out),
    )(prep["a_hat"], prep["pool"], x_p,
      prep["w1"], prep["b1"], prep["w2"], prep["b2"], prep["w3"], prep["b3"],
      prep["w_lin"], prep["b_lin"])

    return out_p[:num_graphs, :num_classes]


# ---------------------------------------------------------------------------
# Glue: normalized adjacency, pooling matrix, parameters
# ---------------------------------------------------------------------------
def build_a_hat(edge_index, num_nodes):
    """Dense symmetric-normalized adjacency with self-loops (GCNConv default).
    Assumes a coalesced edge_index (no duplicate edges), as torch_geometric does."""
    src, dst = edge_index[0], edge_index[1]
    a = jnp.zeros((num_nodes, num_nodes), jnp.float32).at[dst, src].add(1.0)
    a = a + jnp.eye(num_nodes, dtype=jnp.float32)          # add self loops
    deg = a.sum(axis=1)
    dinv = jnp.where(deg > 0, 1.0 / jnp.sqrt(deg), 0.0)
    return dinv[:, None] * a * dinv[None, :]


def build_mean_pool(batch, num_graphs, num_nodes):
    """P[g, n] = 1/count[g] if batch[n] == g else 0."""
    onehot = (batch[None, :] == jnp.arange(num_graphs)[:, None]).astype(jnp.float32)
    counts = jnp.maximum(onehot.sum(axis=1, keepdims=True), 1.0)
    return onehot / counts


def init_params(key, num_node_features, hidden, num_classes):
    ks = jax.random.split(key, 8)

    def glorot(k, fan_in, fan_out):
        scale = jnp.sqrt(6.0 / (fan_in + fan_out))
        return jax.random.uniform(k, (fan_in, fan_out), jnp.float32, -scale, scale)

    return {
        "w1": glorot(ks[0], num_node_features, hidden),
        "b1": jnp.zeros((1, hidden), jnp.float32),
        "w2": glorot(ks[1], hidden, hidden),
        "b2": jnp.zeros((1, hidden), jnp.float32),
        "w3": glorot(ks[2], hidden, hidden),
        "b3": jnp.zeros((1, hidden), jnp.float32),
        # torch Linear stores W as [out, in]; kept pre-transposed [in, out] here
        "w_lin": glorot(ks[3], hidden, num_classes),
        "b_lin": jax.random.uniform(ks[4], (1, num_classes), jnp.float32,
                                    -1.0 / jnp.sqrt(hidden), 1.0 / jnp.sqrt(hidden)),
    }


# ---------------------------------------------------------------------------
if __name__ == "__main__":
    num_nodes = 16
    num_node_features = 8
    hidden_channels = 32
    num_classes = 4
    num_graphs = 2

    key = jax.random.PRNGKey(0)
    k_x, k_p = jax.random.split(key)

    # node features [N, F]
    x = jax.random.normal(k_x, (num_nodes, num_node_features), jnp.float32)

    # two disjoint ring graphs of 8 nodes each (undirected: both directions listed)
    edges = []
    for g in range(num_graphs):
        base = g * 8
        for i in range(8):
            u, v = base + i, base + (i + 1) % 8
            edges.append((u, v))
            edges.append((v, u))
    edge_index = jnp.array(edges, dtype=jnp.int32).T               # [2, E]
    batch = jnp.repeat(jnp.arange(num_graphs, dtype=jnp.int32), 8)  # [N]

    a_hat = build_a_hat(edge_index, num_nodes)
    pool_mat = build_mean_pool(batch, num_graphs, num_nodes)
    params = init_params(k_p, num_node_features, hidden_channels, num_classes)

    # one-time padding / bf16 cast of all static operands
    prep = prepare_gcn(params, a_hat, pool_mat, num_node_features, num_graphs, num_classes)
    prep = jax.tree_util.tree_map(jax.block_until_ready, prep)

    out = gcn_forward(prep, x, num_graphs, num_classes)
    jax.block_until_ready(out)
    assert out.shape == (num_graphs, num_classes)
    assert bool(jnp.all(jnp.isfinite(out)))
    print("KERNEL_OK")
</pallas_src>

<mosaic_0001>
module attributes {stable_mosaic.version = 11 : i64} {
  func.func @gcn_fused_kernel(%arg0: memref<128x128xbf16, #tpu.memory_space<vmem>>, %arg1: memref<16x128xbf16, #tpu.memory_space<vmem>>, %arg2: memref<128x128xbf16, #tpu.memory_space<vmem>>, %arg3: memref<128x128xbf16, #tpu.memory_space<vmem>>, %arg4: memref<1x128xf32, #tpu.memory_space<vmem>>, %arg5: memref<128x128xbf16, #tpu.memory_space<vmem>>, %arg6: memref<1x128xf32, #tpu.memory_space<vmem>>, %arg7: memref<128x128xbf16, #tpu.memory_space<vmem>>, %arg8: memref<1x128xf32, #tpu.memory_space<vmem>>, %arg9: memref<128x128xbf16, #tpu.memory_space<vmem>>, %arg10: memref<1x128xf32, #tpu.memory_space<vmem>>, %arg11: memref<16x128xf32, #tpu.memory_space<vmem>>) attributes {dimension_semantics = [], scalar_prefetch = 0 : i64, scratch_operands = 0 : i64, tpu.core_type = #tpu.core_type<tc>} {
    %c0 = arith.constant 0 : index
    %c0_0 = arith.constant 0 : index
    %0 = vector.load %arg0[%c0, %c0_0] : memref<128x128xbf16, #tpu.memory_space<vmem>>, vector<128x128xbf16>
    %c0_1 = arith.constant 0 : index
    %c0_2 = arith.constant 0 : index
    %1 = vector.load %arg2[%c0_1, %c0_2] : memref<128x128xbf16, #tpu.memory_space<vmem>>, vector<128x128xbf16>
    %c0_3 = arith.constant 0 : index
    %c0_4 = arith.constant 0 : index
    %2 = vector.load %arg3[%c0_3, %c0_4] : memref<128x128xbf16, #tpu.memory_space<vmem>>, vector<128x128xbf16>
    %cst = arith.constant dense<0.000000e+00> : vector<128x128xf32>
    %3 = tpu.matmul %1, %2, %cst {dimension_numbers = #tpu.dot_dimension_numbers<[1], [0], [0], [1], [0, 0, 1, 1], [], []>} : vector<128x128xbf16>, vector<128x128xbf16>, vector<128x128xf32> -> vector<128x128xf32>
    %4 = arith.truncf %3 : vector<128x128xf32> to vector<128x128xbf16>
    %cst_5 = arith.constant dense<0.000000e+00> : vector<128x128xf32>
    %5 = tpu.matmul %0, %4, %cst_5 {dimension_numbers = #tpu.dot_dimension_numbers<[1], [0], [0], [1], [0, 0, 1, 1], [], []>} : vector<128x128xbf16>, vector<128x128xbf16>, vector<128x128xf32> -> vector<128x128xf32>
    %c0_6 = arith.constant 0 : index
    %c0_7 = arith.constant 0 : index
    %6 = vector.load %arg4[%c0_6, %c0_7] : memref<1x128xf32, #tpu.memory_space<vmem>>, vector<1x128xf32>
    %7 = vector.broadcast %6 : vector<1x128xf32> to vector<128x128xf32>
    %8 = arith.addf %5, %7 : vector<128x128xf32>
    %cst_8 = arith.constant 0.000000e+00 : f32
    %9 = vector.broadcast %cst_8 : f32 to vector<128x128xf32>
    %10 = arith.maximumf %8, %9 : vector<128x128xf32>
    %11 = arith.truncf %10 : vector<128x128xf32> to vector<128x128xbf16>
    %c0_9 = arith.constant 0 : index
    %c0_10 = arith.constant 0 : index
    %12 = vector.load %arg5[%c0_9, %c0_10] : memref<128x128xbf16, #tpu.memory_space<vmem>>, vector<128x128xbf16>
    %cst_11 = arith.constant dense<0.000000e+00> : vector<128x128xf32>
    %13 = tpu.matmul %11, %12, %cst_11 {dimension_numbers = #tpu.dot_dimension_numbers<[1], [0], [0], [1], [0, 0, 1, 1], [], []>} : vector<128x128xbf16>, vector<128x128xbf16>, vector<128x128xf32> -> vector<128x128xf32>
    %14 = arith.truncf %13 : vector<128x128xf32> to vector<128x128xbf16>
    %cst_12 = arith.constant dense<0.000000e+00> : vector<128x128xf32>
    %15 = tpu.matmul %0, %14, %cst_12 {dimension_numbers = #tpu.dot_dimension_numbers<[1], [0], [0], [1], [0, 0, 1, 1], [], []>} : vector<128x128xbf16>, vector<128x128xbf16>, vector<128x128xf32> -> vector<128x128xf32>
    %c0_13 = arith.constant 0 : index
    %c0_14 = arith.constant 0 : index
    %16 = vector.load %arg6[%c0_13, %c0_14] : memref<1x128xf32, #tpu.memory_space<vmem>>, vector<1x128xf32>
    %17 = vector.broadcast %16 : vector<1x128xf32> to vector<128x128xf32>
    %18 = arith.addf %15, %17 : vector<128x128xf32>
    %cst_15 = arith.constant 0.000000e+00 : f32
    %19 = vector.broadcast %cst_15 : f32 to vector<128x128xf32>
    %20 = arith.maximumf %18, %19 : vector<128x128xf32>
    %21 = arith.truncf %20 : vector<128x128xf32> to vector<128x128xbf16>
    %c0_16 = arith.constant 0 : index
    %c0_17 = arith.constant 0 : index
    %22 = vector.load %arg7[%c0_16, %c0_17] : memref<128x128xbf16, #tpu.memory_space<vmem>>, vector<128x128xbf16>
    %cst_18 = arith.constant dense<0.000000e+00> : vector<128x128xf32>
    %23 = tpu.matmul %21, %22, %cst_18 {dimension_numbers = #tpu.dot_dimension_numbers<[1], [0], [0], [1], [0, 0, 1, 1], [], []>} : vector<128x128xbf16>, vector<128x128xbf16>, vector<128x128xf32> -> vector<128x128xf32>
    %24 = arith.truncf %23 : vector<128x128xf32> to vector<128x128xbf16>
    %cst_19 = arith.constant dense<0.000000e+00> : vector<128x128xf32>
    %25 = tpu.matmul %0, %24, %cst_19 {dimension_numbers = #tpu.dot_dimension_numbers<[1], [0], [0], [1], [0, 0, 1, 1], [], []>} : vector<128x128xbf16>, vector<128x128xbf16>, vector<128x128xf32> -> vector<128x128xf32>
    %c0_20 = arith.constant 0 : index
    %c0_21 = arith.constant 0 : index
    %26 = vector.load %arg8[%c0_20, %c0_21] : memref<1x128xf32, #tpu.memory_space<vmem>>, vector<1x128xf32>
    %27 = vector.broadcast %26 : vector<1x128xf32> to vector<128x128xf32>
    %28 = arith.addf %25, %27 : vector<128x128xf32>
    %c0_22 = arith.constant 0 : index
    %c0_23 = arith.constant 0 : index
    %29 = vector.load %arg1[%c0_22, %c0_23] : memref<16x128xbf16, #tpu.memory_space<vmem>>, vector<16x128xbf16>
    %30 = arith.truncf %28 : vector<128x128xf32> to vector<128x128xbf16>
    %cst_24 = arith.constant dense<0.000000e+00> : vector<16x128xf32>
    %31 = tpu.matmul %29, %30, %cst_24 {dimension_numbers = #tpu.dot_dimension_numbers<[1], [0], [0], [1], [0, 0, 1, 1], [], []>} : vector<16x128xbf16>, vector<128x128xbf16>, vector<16x128xf32> -> vector<16x128xf32>
    %32 = arith.truncf %31 : vector<16x128xf32> to vector<16x128xbf16>
    %c0_25 = arith.constant 0 : index
    %c0_26 = arith.constant 0 : index
    %33 = vector.load %arg9[%c0_25, %c0_26] : memref<128x128xbf16, #tpu.memory_space<vmem>>, vector<128x128xbf16>
    %cst_27 = arith.constant dense<0.000000e+00> : vector<16x128xf32>
    %34 = tpu.matmul %32, %33, %cst_27 {dimension_numbers = #tpu.dot_dimension_numbers<[1], [0], [0], [1], [0, 0, 1, 1], [], []>} : vector<16x128xbf16>, vector<128x128xbf16>, vector<16x128xf32> -> vector<16x128xf32>
    %c0_28 = arith.constant 0 : index
    %c0_29 = arith.constant 0 : index
    %35 = vector.load %arg10[%c0_28, %c0_29] : memref<1x128xf32, #tpu.memory_space<vmem>>, vector<1x128xf32>
    %36 = vector.broadcast %35 : vector<1x128xf32> to vector<16x128xf32>
    %37 = arith.addf %34, %36 : vector<16x128xf32>
    %c0_30 = arith.constant 0 : index
    %c0_31 = arith.constant 0 : index
    %38 = vector.load %arg11[%c0_30, %c0_31] : memref<16x128xf32, #tpu.memory_space<vmem>>, vector<16x128xf32>
    tpu.vector_store %arg11[%c0_30, %c0_31], %37 {strides = array<i32>} : memref<16x128xf32, #tpu.memory_space<vmem>>, vector<16x128xf32>,
    return
  }
}

</mosaic_0001>

<llo_original>
// kernel: gcn_forward.1
$region0: #{gcn_forward.1}
  #allocation0 [shape = 'u32[]', space=smem, size = 0x4, offset = 0x4, fixed_abs, tag = 'smem constant byte address 0x4 - core index']
  #allocation1 [shape = 'u32[144,128]{1,0:T(1,128)}', space=vmem, size = 0x12000, scoped, tag = 'internal scratch']
  %s0 = inlined_call_operand.vmem [shape: bf16[128,128], index: 0, kind: input, shape index: {}]
  %s1 = inlined_call_operand.vmem [shape: bf16[16,128], index: 1, kind: input, shape index: {}]
  %s2 = inlined_call_operand.vmem [shape: bf16[128,128], index: 2, kind: input, shape index: {}]
  %s3 = inlined_call_operand.hbm [shape: bf16[128,128], index: 3, kind: input, shape index: {}]
  %s4 = inlined_call_operand.vmem [shape: f32[1,128], index: 4, kind: input, shape index: {}]
  %s5 = inlined_call_operand.hbm [shape: bf16[128,128], index: 5, kind: input, shape index: {}]
  %s6 = inlined_call_operand.vmem [shape: f32[1,128], index: 6, kind: input, shape index: {}]
  %s7 = inlined_call_operand.hbm [shape: bf16[128,128], index: 7, kind: input, shape index: {}]
  %s8 = inlined_call_operand.vmem [shape: f32[1,128], index: 8, kind: input, shape index: {}]
  %s9 = inlined_call_operand.hbm [shape: bf16[128,128], index: 9, kind: input, shape index: {}]
  %s10 = inlined_call_operand.vmem [shape: f32[1,128], index: 10, kind: input, shape index: {}]
  %s11 = inlined_call_operand.vmem [shape: f32[16,128], index: 11, kind: output, shape index: {}]
  %s12 = sld [smem:[#allocation0]]
  $region70: #{gcn_forward.1} parent=0
    _
  %s14 = ssub.s32 1, %s12
  %s15 = scalar_select 0, %s14, %s12
  $region1: #{gcn_forward.1} parent=0
    #allocation2 [shape = 'u8[32768]{0}', space=vmem, size = 0x8000, scoped, tag = 'input window, operand 3, single buffered']
    #allocation3 [shape = 's32[1]{0}', space=sflag, size = 0x4, scoped, tag = 'scoped memory for gcn_forward.1']
    #allocation4 [shape = 'u8[32768]{0}', space=vmem, size = 0x8000, scoped, tag = 'input window, operand 5, single buffered']
    #allocation5 [shape = 's32[1]{0}', space=sflag, size = 0x4, scoped, tag = 'scoped memory for gcn_forward.1']
    #allocation6 [shape = 'u8[32768]{0}', space=vmem, size = 0x8000, scoped, tag = 'input window, operand 7, single buffered']
    #allocation7 [shape = 'u8[32768]{0}', space=vmem, size = 0x8000, scoped, tag = 'input window, operand 9, single buffered']
    #allocation8 [shape = 's32[1]{0}', space=sflag, size = 0x4, scoped, tag = 'scoped memory for gcn_forward.1']
    %16 = vsyncpa [#allocation3], 0
    %17 = vsyncpa [#allocation5], 0
    %18 = vsyncpa [#allocation8], 0
    // Predicated region
    $region2: #{gcn_forward.1} parent=1 // pred_check
      _
    $region3: #{gcn_forward.1} parent=1 // pred_check_branch
      %20 = sbr.rel (0) target = $region5
    $region4: #{gcn_forward.1} parent=1 // pred_region
      _
    $region5: #{gcn_forward.1} parent=1 // pred_fallthru
      _
    // Predicated region
    $region6: #{gcn_forward.1} parent=1 // pred_check
      _
    $region7: #{gcn_forward.1} parent=1 // pred_check_branch
      %22 = sbr.rel (0) target = $region9
    $region8: #{gcn_forward.1} parent=1 // pred_region
      _
    $region9: #{gcn_forward.1} parent=1 // pred_fallthru
      _
    // Predicated region
    $region10: #{gcn_forward.1} parent=1 // pred_check
      _
    $region11: #{gcn_forward.1} parent=1 // pred_check_branch
      %24 = sbr.rel (0) target = $region13
    $region12: #{gcn_forward.1} parent=1 // pred_region
      _
    $region13: #{gcn_forward.1} parent=1 // pred_fallthru
      _
    // Predicated region
    $region14: #{gcn_forward.1} parent=1 // pred_check
      _
    $region15: #{gcn_forward.1} parent=1 // pred_check_branch
      %26 = sbr.rel (0) target = $region17
    $region16: #{gcn_forward.1} parent=1 // pred_region
      %s28 = ssub.s32 1024, 1024
      %29 = vsyncadd [#allocation3], %s28
      %s30 = sshll.u32 [#allocation2], 4
      %s31 = int_to_ptr.vmem [resolvable:$true] %s30
      %36 = dma.hbm_to_vmem [thread:$0]  %s3, 1024, %s31, [#allocation3], 64, 64, 4
    $region17: #{gcn_forward.1} parent=1 // pred_fallthru
      _
    // Predicated region
    $region18: #{gcn_forward.1} parent=1 // pred_check
      _
    $region19: #{gcn_forward.1} parent=1 // pred_check_branch
      %38 = sbr.rel (0) target = $region21
    $region20: #{gcn_forward.1} parent=1 // pred_region
      _
    $region21: #{gcn_forward.1} parent=1 // pred_fallthru
      _
    // Predicated region
    $region22: #{gcn_forward.1} parent=1 // pred_check
      _
    $region23: #{gcn_forward.1} parent=1 // pred_check_branch
      %40 = sbr.rel (0) target = $region25
    $region24: #{gcn_forward.1} parent=1 // pred_region
      %s42 = ssub.s32 1024, 1024
      %43 = vsyncadd [#allocation5], %s42
      %s44 = sshll.u32 [#allocation4], 4
      %s45 = int_to_ptr.vmem [resolvable:$true] %s44
      %50 = dma.hbm_to_vmem [thread:$0]  %s5, 1024, %s45, [#allocation5], 64, 64, 4
    $region25: #{gcn_forward.1} parent=1 // pred_fallthru
      _
    // Predicated region
    $region26: #{gcn_forward.1} parent=1 // pred_check
      _
    $region27: #{gcn_forward.1} parent=1 // pred_check_branch
      %52 = sbr.rel (0) target = $region29
    $region28: #{gcn_forward.1} parent=1 // pred_region
      _
    $region29: #{gcn_forward.1} parent=1 // pred_fallthru
      _
    // Predicated region
    $region30: #{gcn_forward.1} parent=1 // pred_check
      _
    $region31: #{gcn_forward.1} parent=1 // pred_check_branch
      %54 = sbr.rel (0) target = $region33
    $region32: #{gcn_forward.1} parent=1 // pred_region
      %s56 = ssub.s32 1024, 1024
      %57 = vsyncadd [#allocation5], %s56
      %s58 = sshll.u32 [#allocation6], 4
      %s59 = int_to_ptr.vmem [resolvable:$true] %s58
      %64 = dma.hbm_to_vmem [thread:$0]  %s7, 1024, %s59, [#allocation5], 64, 64, 4
    $region33: #{gcn_forward.1} parent=1 // pred_fallthru
      _
    // Predicated region
    $region34: #{gcn_forward.1} parent=1 // pred_check
      _
    $region35: #{gcn_forward.1} parent=1 // pred_check_branch
      %66 = sbr.rel (0) target = $region37
    $region36: #{gcn_forward.1} parent=1 // pred_region
      _
    $region37: #{gcn_forward.1} parent=1 // pred_fallthru
      _
    // Predicated region
    $region38: #{gcn_forward.1} parent=1 // pred_check
      _
    $region39: #{gcn_forward.1} parent=1 // pred_check_branch
      %68 = sbr.rel (0) target = $region41
    $region40: #{gcn_forward.1} parent=1 // pred_region
      %s70 = ssub.s32 1024, 1024
      %71 = vsyncadd [#allocation8], %s70
      %s72 = sshll.u32 [#allocation7], 4
      %s73 = int_to_ptr.vmem [resolvable:$true] %s72
      %78 = dma.hbm_to_vmem [thread:$0]  %s9, 1024, %s73, [#allocation8], 64, 64, 4
    $region41: #{gcn_forward.1} parent=1 // pred_fallthru
      _
    // Predicated region
    $region42: #{gcn_forward.1} parent=1 // pred_check
      _
    $region43: #{gcn_forward.1} parent=1 // pred_check_branch
      %80 = sbr.rel (0) target = $region45
    $region44: #{gcn_forward.1} parent=1 // pred_region
      _
    $region45: #{gcn_forward.1} parent=1 // pred_fallthru
      _
    // Predicated region
    $region46: #{gcn_forward.1} parent=1 // pred_check
      _
    $region47: #{gcn_forward.1} parent=1 // pred_check_branch
      %82 = sbr.rel (0) target = $region49
    $region48: #{gcn_forward.1} parent=1 // pred_region
      %83 = dma.done [#allocation3], 1024
    $region49: #{gcn_forward.1} parent=1 // pred_fallthru
      _
    // Predicated region
    $region50: #{gcn_forward.1} parent=1 // pred_check
      _
    $region51: #{gcn_forward.1} parent=1 // pred_check_branch
      %85 = sbr.rel (0) target = $region53
    $region52: #{gcn_forward.1} parent=1 // pred_region
      %86 = dma.done [#allocation5], 1024
    $region53: #{gcn_forward.1} parent=1 // pred_fallthru
      _
    // Predicated region
    $region54: #{gcn_forward.1} parent=1 // pred_check
      _
    $region55: #{gcn_forward.1} parent=1 // pred_check_branch
      %88 = sbr.rel (0) target = $region57
    $region56: #{gcn_forward.1} parent=1 // pred_region
      %89 = dma.done [#allocation5], 1024
    $region57: #{gcn_forward.1} parent=1 // pred_fallthru
      _
    // Predicated region
    $region58: #{gcn_forward.1} parent=1 // pred_check
      _
    $region59: #{gcn_forward.1} parent=1 // pred_check_branch
      %91 = sbr.rel (0) target = $region61
    $region60: #{gcn_forward.1} parent=1 // pred_region
      %92 = dma.done [#allocation8], 1024
    $region61: #{gcn_forward.1} parent=1 // pred_fallthru
      _
    %v94 = vld [vmem:[%s0] sm:$0xf]
    %v95 = vld [vmem:[%s0 + $0x4] sm:$0xf]
    %v96 = vld [vmem:[%s0 + $0x8] sm:$0xf]
    %v97 = vld [vmem:[%s0 + $0xc] sm:$0xf]
    %v98 = vld [vmem:[%s0 + $0x10] sm:$0xf]
    %v99 = vld [vmem:[%s0 + $0x14] sm:$0xf]
    %v100 = vld [vmem:[%s0 + $0x18] sm:$0xf]
    %v101 = vld [vmem:[%s0 + $0x1c] sm:$0xf]
    %v102 = vld [vmem:[%s0 + $0x20] sm:$0xf]
    %v103 = vld [vmem:[%s0 + $0x24] sm:$0xf]
    %v104 = vld [vmem:[%s0 + $0x28] sm:$0xf]
    %v105 = vld [vmem:[%s0 + $0x2c] sm:$0xf]
    %v106 = vld [vmem:[%s0 + $0x30] sm:$0xf]
    %v107 = vld [vmem:[%s0 + $0x34] sm:$0xf]
    %v108 = vld [vmem:[%s0 + $0x38] sm:$0xf]
    %v109 = vld [vmem:[%s0 + $0x3c] sm:$0xf]
    %v110 = vld [vmem:[%s2] sm:$0xf]
    %v111 = vld [vmem:[%s2 + $0x4] sm:$0xf]
    %v112 = vld [vmem:[%s2 + $0x8] sm:$0xf]
    %v113 = vld [vmem:[%s2 + $0xc] sm:$0xf]
    %v114 = vld [vmem:[%s2 + $0x10] sm:$0xf]
    %v115 = vld [vmem:[%s2 + $0x14] sm:$0xf]
    %v116 = vld [vmem:[%s2 + $0x18] sm:$0xf]
    %v117 = vld [vmem:[%s2 + $0x1c] sm:$0xf]
    %v118 = vld [vmem:[%s2 + $0x20] sm:$0xf]
    %v119 = vld [vmem:[%s2 + $0x24] sm:$0xf]
    %v120 = vld [vmem:[%s2 + $0x28] sm:$0xf]
    %v121 = vld [vmem:[%s2 + $0x2c] sm:$0xf]
    %v122 = vld [vmem:[%s2 + $0x30] sm:$0xf]
    %v123 = vld [vmem:[%s2 + $0x34] sm:$0xf]
    %v124 = vld [vmem:[%s2 + $0x38] sm:$0xf]
    %v125 = vld [vmem:[%s2 + $0x3c] sm:$0xf]
    %v126 = vld [vmem:[#allocation2] sm:$0xf]
    %v127 = vld [vmem:[#allocation2 + $0x4] sm:$0xf]
    %v128 = vld [vmem:[#allocation2 + $0x8] sm:$0xf]
    %v129 = vld [vmem:[#allocation2 + $0xc] sm:$0xf]
    %v130 = vld [vmem:[#allocation2 + $0x10] sm:$0xf]
    %v131 = vld [vmem:[#allocation2 + $0x14] sm:$0xf]
    %v132 = vld [vmem:[#allocation2 + $0x18] sm:$0xf]
    %v133 = vld [vmem:[#allocation2 + $0x1c] sm:$0xf]
    %v134 = vld [vmem:[#allocation2 + $0x20] sm:$0xf]
    %v135 = vld [vmem:[#allocation2 + $0x24] sm:$0xf]
    %v136 = vld [vmem:[#allocation2 + $0x28] sm:$0xf]
    %v137 = vld [vmem:[#allocation2 + $0x2c] sm:$0xf]
    %v138 = vld [vmem:[#allocation2 + $0x30] sm:$0xf]
    %v139 = vld [vmem:[#allocation2 + $0x34] sm:$0xf]
    %v140 = vld [vmem:[#allocation2 + $0x38] sm:$0xf]
    %v141 = vld [vmem:[#allocation2 + $0x3c] sm:$0xf]
    %v158 = vunpack.c.l.b16 %v110
    %v159 = vunpack.c.l.b16 %v111
    %v160 = vunpack.c.l.b16 %v112
    %v161 = vunpack.c.l.b16 %v113
    %v162 = vunpack.c.l.b16 %v114
    %v163 = vunpack.c.l.b16 %v115
    %v164 = vunpack.c.l.b16 %v116
    %v165 = vunpack.c.l.b16 %v117
    %v166 = vunpack.c.l.b16 %v118
    %v167 = vunpack.c.l.b16 %v119
    %v168 = vunpack.c.l.b16 %v120
    %v169 = vunpack.c.l.b16 %v121
    %v170 = vunpack.c.l.b16 %v122
    %v171 = vunpack.c.l.b16 %v123
    %v172 = vunpack.c.l.b16 %v124
    %v173 = vunpack.c.l.b16 %v125
    %v174 = vpack.c.b16 %v159, %v158
    %v175 = vpack.c.b16 %v161, %v160
    %v176 = vpack.c.b16 %v163, %v162
    %v177 = vpack.c.b16 %v165, %v164
    %v178 = vpack.c.b16 %v167, %v166
    %v179 = vpack.c.b16 %v169, %v168
    %v180 = vpack.c.b16 %v171, %v170
    %v181 = vpack.c.b16 %v173, %v172
    %v206 = vunpack.c.l.b16 %v126
    %v207 = vunpack.c.l.b16 %v127
    %v208 = vunpack.c.l.b16 %v128
    %v209 = vunpack.c.l.b16 %v129
    %v210 = vunpack.c.l.b16 %v130
    %v211 = vunpack.c.l.b16 %v131
    %v212 = vunpack.c.l.b16 %v132
    %v213 = vunpack.c.l.b16 %v133
    %v214 = vunpack.c.l.b16 %v134
    %v215 = vunpack.c.l.b16 %v135
    %v216 = vunpack.c.l.b16 %v136
    %v217 = vunpack.c.l.b16 %v137
    %v218 = vunpack.c.l.b16 %v138
    %v219 = vunpack.c.l.b16 %v139
    %v220 = vunpack.c.l.b16 %v140
    %v221 = vunpack.c.l.b16 %v141
    %v222 = vpack.c.b16 %v207, %v206
    %v223 = vpack.c.b16 %v209, %v208
    %v224 = vpack.c.b16 %v211, %v210
    %v225 = vpack.c.b16 %v213, %v212
    %v226 = vpack.c.b16 %v215, %v214
    %v227 = vpack.c.b16 %v217, %v216
    %v228 = vpack.c.b16 %v219, %v218
    %v229 = vpack.c.b16 %v221, %v220
    %238 = vmatprep.subr.bf16.mxu0 0
    %239 = vmatpush1.bf16.msra.mxu0 %v229
    %240 = vmatprep.subr.bf16.mxu0 0
    %241 = vmatpush1.bf16.msra.mxu0 %v228
    %242 = vmatprep.subr.bf16.mxu0 0
    %243 = vmatpush1.bf16.msra.mxu0 %v227
    %244 = vmatprep.subr.bf16.mxu0 0
    %245 = vmatpush1.bf16.msra.mxu0 %v226
    %246 = vmatprep.subr.bf16.mxu0 0
    %247 = vmatpush1.bf16.msra.mxu0 %v225
    %248 = vmatprep.subr.bf16.mxu0 0
    %249 = vmatpush1.bf16.msra.mxu0 %v224
    %250 = vmatprep.subr.bf16.mxu0 0
    %251 = vmatpush1.bf16.msra.mxu0 %v223
    %252 = vmatprep.subr.bf16.mxu0 0
    %253 = vmatpush1.bf16.msra.mxu0 %v222
    %254 = vmatprep.subr.bf16.mxu0 0
    %255 = vmatpush2.bf16.msra.mxu0 0
    %256 = vmatprep.subr.bf16.mxu0 0
    %257 = vmatpush2.bf16.msra.mxu0 0
    %258 = vmatprep.subr.bf16.mxu0 0
    %259 = vmatpush2.bf16.msra.mxu0 0
    %260 = vmatprep.subr.bf16.mxu0 0
    %261 = vmatpush2.bf16.msra.mxu0 0
    %262 = vmatprep.subr.bf16.mxu0 0
    %263 = vmatpush2.bf16.msra.mxu0 0
    %264 = vmatprep.subr.bf16.mxu0 0
    %265 = vmatpush2.bf16.msra.mxu0 0
    %266 = vmatprep.subr.bf16.mxu0 0
    %267 = vmatpush2.bf16.msra.mxu0 0
    %268 = vmatprep.subr.bf16.mxu0 0
    %269 = vmatpush2.bf16.msra.mxu0 0
    %270 = vmatprep.mubr.bf16.mxu0 0
    %271 = vmatmul.mubr.bf16.gmra.mxu0 %v174
    %v272 = vpop.f32.mrf.mxu0
    %v273 = vadd.f32 0.0, %v272
    %v274 = vpop.f32.mrf.mxu0
    %v275 = vpop.f32.mrf.mxu0
    %v276 = vadd.f32 0.0, %v275
    %v277 = vpop.f32.mrf.mxu0
    %278 = vmatprep.mubr.bf16.mxu0 0
    %279 = vmatmul.mubr.bf16.gmra.mxu0 %v175
    %v280 = vpop.f32.mrf.mxu0
    %v281 = vadd.f32 0.0, %v280
    %v282 = vpop.f32.mrf.mxu0
    %v283 = vpop.f32.mrf.mxu0
    %v284 = vadd.f32 0.0, %v283
    %v285 = vpop.f32.mrf.mxu0
    %286 = vmatprep.mubr.bf16.mxu0 0
    %287 = vmatmul.mubr.bf16.gmra.mxu0 %v176
    %v288 = vpop.f32.mrf.mxu0
    %v289 = vadd.f32 0.0, %v288
    %v290 = vpop.f32.mrf.mxu0
    %v291 = vpop.f32.mrf.mxu0
    %v292 = vadd.f32 0.0, %v291
    %v293 = vpop.f32.mrf.mxu0
    %294 = vmatprep.mubr.bf16.mxu0 0
    %295 = vmatmul.mubr.bf16.gmra.mxu0 %v177
    %v296 = vpop.f32.mrf.mxu0
    %v297 = vadd.f32 0.0, %v296
    %v298 = vpop.f32.mrf.mxu0
    %v299 = vpop.f32.mrf.mxu0
    %v300 = vadd.f32 0.0, %v299
    %v301 = vpop.f32.mrf.mxu0
    %302 = vmatprep.mubr.bf16.mxu0 0
    %303 = vmatmul.mubr.bf16.gmra.mxu0 %v178
    %v304 = vpop.f32.mrf.mxu0
    %v305 = vadd.f32 0.0, %v304
    %v306 = vpop.f32.mrf.mxu0
    %v307 = vpop.f32.mrf.mxu0
    %v308 = vadd.f32 0.0, %v307
    %v309 = vpop.f32.mrf.mxu0
    %310 = vmatprep.mubr.bf16.mxu0 0
    %311 = vmatmul.mubr.bf16.gmra.mxu0 %v179
    %v312 = vpop.f32.mrf.mxu0
    %v313 = vadd.f32 0.0, %v312
    %v314 = vpop.f32.mrf.mxu0
    %v315 = vpop.f32.mrf.mxu0
    %v316 = vadd.f32 0.0, %v315
    %v317 = vpop.f32.mrf.mxu0
    %318 = vmatprep.mubr.bf16.mxu0 0
    %319 = vmatmul.mubr.bf16.gmra.mxu0 %v180
    %v320 = vpop.f32.mrf.mxu0
    %v321 = vadd.f32 0.0, %v320
    %v322 = vpop.f32.mrf.mxu0
    %v323 = vpop.f32.mrf.mxu0
    %v324 = vadd.f32 0.0, %v323
    %v325 = vpop.f32.mrf.mxu0
    %326 = vmatprep.mubr.bf16.mxu0 0
    %327 = vmatmul.mubr.bf16.gmra.mxu0 %v181
    %v328 = vpop.f32.mrf.mxu0
    %v329 = vadd.f32 0.0, %v328
    %v330 = vpop.f32.mrf.mxu0
    %v331 = vpop.f32.mrf.mxu0
    %v332 = vadd.f32 0.0, %v331
    %v333 = vpop.f32.mrf.mxu0
    %334 = vdwg.mxu0
    %v335 = vpack.c.bf16 %v276, %v273
    %v336 = vpack.c.bf16 %v284, %v281
    %v337 = vpack.c.bf16 %v292, %v289
    %v338 = vpack.c.bf16 %v300, %v297
    %v339 = vpack.c.bf16 %v308, %v305
    %v340 = vpack.c.bf16 %v316, %v313
    %v341 = vpack.c.bf16 %v324, %v321
    %v342 = vpack.c.bf16 %v332, %v329
    %v343 = vld [vmem:[%s4] sm:$0x1]
    %v345 = vlaneseq
    %v346 = vshrl.u32 %v345, 7
    %v347 = vsub.s32 0, %v346
    %v348 = vrot.slane %v343, %v347
    %v366 = vunpack.c.l.b16 %v94
    %v367 = vunpack.c.l.b16 %v95
    %v368 = vunpack.c.l.b16 %v96
    %v369 = vunpack.c.l.b16 %v97
    %v370 = vunpack.c.l.b16 %v98
    %v371 = vunpack.c.l.b16 %v99
    %v372 = vunpack.c.l.b16 %v100
    %v373 = vunpack.c.l.b16 %v101
    %v374 = vunpack.c.l.b16 %v102
    %v375 = vunpack.c.l.b16 %v103
    %v376 = vunpack.c.l.b16 %v104
    %v377 = vunpack.c.l.b16 %v105
    %v378 = vunpack.c.l.b16 %v106
    %v379 = vunpack.c.l.b16 %v107
    %v380 = vunpack.c.l.b16 %v108
    %v381 = vunpack.c.l.b16 %v109
    %v382 = vpack.c.b16 %v367, %v366
    %v383 = vpack.c.b16 %v369, %v368
    %v384 = vpack.c.b16 %v371, %v370
    %v385 = vpack.c.b16 %v373, %v372
    %v386 = vpack.c.b16 %v375, %v374
    %v387 = vpack.c.b16 %v377, %v376
    %v388 = vpack.c.b16 %v379, %v378
    %v389 = vpack.c.b16 %v381, %v380
    %398 = vmatprep.subr.bf16.mxu0 0
    %399 = vmatpush1.bf16.msra.mxu0 %v342
    %400 = vmatprep.subr.bf16.mxu0 0
    %401 = vmatpush1.bf16.msra.mxu0 %v341
    %402 = vmatprep.subr.bf16.mxu0 0
    %403 = vmatpush1.bf16.msra.mxu0 %v340
    %404 = vmatprep.subr.bf16.mxu0 0
    %405 = vmatpush1.bf16.msra.mxu0 %v339
    %406 = vmatprep.subr.bf16.mxu0 0
    %407 = vmatpush1.bf16.msra.mxu0 %v338
    %408 = vmatprep.subr.bf16.mxu0 0
    %409 = vmatpush1.bf16.msra.mxu0 %v337
    %410 = vmatprep.subr.bf16.mxu0 0
    %411 = vmatpush1.bf16.msra.mxu0 %v336
    %412 = vmatprep.subr.bf16.mxu0 0
    %413 = vmatpush1.bf16.msra.mxu0 %v335
    %414 = vmatprep.subr.bf16.mxu0 0
    %415 = vmatpush2.bf16.msra.mxu0 0
    %416 = vmatprep.subr.bf16.mxu0 0
    %417 = vmatpush2.bf16.msra.mxu0 0
    %418 = vmatprep.subr.bf16.mxu0 0
    %419 = vmatpush2.bf16.msra.mxu0 0
    %420 = vmatprep.subr.bf16.mxu0 0
    %421 = vmatpush2.bf16.msra.mxu0 0
    %422 = vmatprep.subr.bf16.mxu0 0
    %423 = vmatpush2.bf16.msra.mxu0 0
    %424 = vmatprep.subr.bf16.mxu0 0
    %425 = vmatpush2.bf16.msra.mxu0 0
    %426 = vmatprep.subr.bf16.mxu0 0
    %427 = vmatpush2.bf16.msra.mxu0 0
    %428 = vmatprep.subr.bf16.mxu0 0
    %429 = vmatpush2.bf16.msra.mxu0 0
    %430 = vmatprep.mubr.bf16.mxu0 0
    %431 = vmatmul.mubr.bf16.gmra.mxu0 %v382
    %v432 = vpop.f32.mrf.mxu0
    %v433 = vadd.f32 %v348, %v432
    %v434 = vpop.f32.mrf.mxu0
    %v435 = vpop.f32.mrf.mxu0
    %v436 = vadd.f32 %v348, %v435
    %v437 = vpop.f32.mrf.mxu0
    %438 = vmatprep.mubr.bf16.mxu0 0
    %439 = vmatmul.mubr.bf16.gmra.mxu0 %v383
    %v440 = vpop.f32.mrf.mxu0
    %v441 = vadd.f32 %v348, %v440
    %v442 = vpop.f32.mrf.mxu0
    %v443 = vpop.f32.mrf.mxu0
    %v444 = vadd.f32 %v348, %v443
    %v445 = vpop.f32.mrf.mxu0
    %446 = vmatprep.mubr.bf16.mxu0 0
    %447 = vmatmul.mubr.bf16.gmra.mxu0 %v384
    %v448 = vpop.f32.mrf.mxu0
    %v449 = vadd.f32 %v348, %v448
    %v450 = vpop.f32.mrf.mxu0
    %v451 = vpop.f32.mrf.mxu0
    %v452 = vadd.f32 %v348, %v451
    %v453 = vpop.f32.mrf.mxu0
    %454 = vmatprep.mubr.bf16.mxu0 0
    %455 = vmatmul.mubr.bf16.gmra.mxu0 %v385
    %v456 = vpop.f32.mrf.mxu0
    %v457 = vadd.f32 %v348, %v456
    %v458 = vpop.f32.mrf.mxu0
    %v459 = vpop.f32.mrf.mxu0
    %v460 = vadd.f32 %v348, %v459
    %v461 = vpop.f32.mrf.mxu0
    %462 = vmatprep.mubr.bf16.mxu0 0
    %463 = vmatmul.mubr.bf16.gmra.mxu0 %v386
    %v464 = vpop.f32.mrf.mxu0
    %v465 = vadd.f32 %v348, %v464
    %v466 = vpop.f32.mrf.mxu0
    %v467 = vpop.f32.mrf.mxu0
    %v468 = vadd.f32 %v348, %v467
    %v469 = vpop.f32.mrf.mxu0
    %470 = vmatprep.mubr.bf16.mxu0 0
    %471 = vmatmul.mubr.bf16.gmra.mxu0 %v387
    %v472 = vpop.f32.mrf.mxu0
    %v473 = vadd.f32 %v348, %v472
    %v474 = vpop.f32.mrf.mxu0
    %v475 = vpop.f32.mrf.mxu0
    %v476 = vadd.f32 %v348, %v475
    %v477 = vpop.f32.mrf.mxu0
    %478 = vmatprep.mubr.bf16.mxu0 0
    %479 = vmatmul.mubr.bf16.gmra.mxu0 %v388
    %v480 = vpop.f32.mrf.mxu0
    %v481 = vadd.f32 %v348, %v480
    %v482 = vpop.f32.mrf.mxu0
    %v483 = vpop.f32.mrf.mxu0
    %v484 = vadd.f32 %v348, %v483
    %v485 = vpop.f32.mrf.mxu0
    %486 = vmatprep.mubr.bf16.mxu0 0
    %487 = vmatmul.mubr.bf16.gmra.mxu0 %v389
    %v488 = vpop.f32.mrf.mxu0
    %v489 = vadd.f32 %v348, %v488
    %v490 = vpop.f32.mrf.mxu0
    %v491 = vpop.f32.mrf.mxu0
    %v492 = vadd.f32 %v348, %v491
    %v493 = vpop.f32.mrf.mxu0
    %494 = vdwg.mxu0
    %v495 = vmax.f32 %v433, 0.0
    %v496 = vmax.f32 %v436, 0.0
    %v497 = vmax.f32 %v441, 0.0
    %v498 = vmax.f32 %v444, 0.0
    %v499 = vmax.f32 %v449, 0.0
    %v500 = vmax.f32 %v452, 0.0
    %v501 = vmax.f32 %v457, 0.0
    %v502 = vmax.f32 %v460, 0.0
    %v503 = vmax.f32 %v465, 0.0
    %v504 = vmax.f32 %v468, 0.0
    %v505 = vmax.f32 %v473, 0.0
    %v506 = vmax.f32 %v476, 0.0
    %v507 = vmax.f32 %v481, 0.0
    %v508 = vmax.f32 %v484, 0.0
    %v509 = vmax.f32 %v489, 0.0
    %v510 = vmax.f32 %v492, 0.0
    %v511 = vpack.c.bf16 %v496, %v495
    %v512 = vpack.c.bf16 %v498, %v497
    %v513 = vpack.c.bf16 %v500, %v499
    %v514 = vpack.c.bf16 %v502, %v501
    %v515 = vpack.c.bf16 %v504, %v503
    %v516 = vpack.c.bf16 %v506, %v505
    %v517 = vpack.c.bf16 %v508, %v507
    %v518 = vpack.c.bf16 %v510, %v509
    %v519 = vld [vmem:[#allocation4] sm:$0xf]
    %v520 = vld [vmem:[#allocation4 + $0x4] sm:$0xf]
    %v521 = vld [vmem:[#allocation4 + $0x8] sm:$0xf]
    %v522 = vld [vmem:[#allocation4 + $0xc] sm:$0xf]
    %v523 = vld [vmem:[#allocation4 + $0x10] sm:$0xf]
    %v524 = vld [vmem:[#allocation4 + $0x14] sm:$0xf]
    %v525 = vld [vmem:[#allocation4 + $0x18] sm:$0xf]
    %v526 = vld [vmem:[#allocation4 + $0x1c] sm:$0xf]
    %v527 = vld [vmem:[#allocation4 + $0x20] sm:$0xf]
    %v528 = vld [vmem:[#allocation4 + $0x24] sm:$0xf]
    %v529 = vld [vmem:[#allocation4 + $0x28] sm:$0xf]
    %v530 = vld [vmem:[#allocation4 + $0x2c] sm:$0xf]
    %v531 = vld [vmem:[#allocation4 + $0x30] sm:$0xf]
    %v532 = vld [vmem:[#allocation4 + $0x34] sm:$0xf]
    %v533 = vld [vmem:[#allocation4 + $0x38] sm:$0xf]
    %v534 = vld [vmem:[#allocation4 + $0x3c] sm:$0xf]
    %v551 = vunpack.c.l.b16 %v519
    %v552 = vunpack.c.l.b16 %v520
    %v553 = vunpack.c.l.b16 %v521
    %v554 = vunpack.c.l.b16 %v522
    %v555 = vunpack.c.l.b16 %v523
    %v556 = vunpack.c.l.b16 %v524
    %v557 = vunpack.c.l.b16 %v525
    %v558 = vunpack.c.l.b16 %v526
    %v559 = vunpack.c.l.b16 %v527
    %v560 = vunpack.c.l.b16 %v528
    %v561 = vunpack.c.l.b16 %v529
    %v562 = vunpack.c.l.b16 %v530
    %v563 = vunpack.c.l.b16 %v531
    %v564 = vunpack.c.l.b16 %v532
    %v565 = vunpack.c.l.b16 %v533
    %v566 = vunpack.c.l.b16 %v534
    %v567 = vpack.c.b16 %v552, %v551
    %v568 = vpack.c.b16 %v554, %v553
    %v569 = vpack.c.b16 %v556, %v555
    %v570 = vpack.c.b16 %v558, %v557
    %v571 = vpack.c.b16 %v560, %v559
    %v572 = vpack.c.b16 %v562, %v561
    %v573 = vpack.c.b16 %v564, %v563
    %v574 = vpack.c.b16 %v566, %v565
    %583 = vmatprep.subr.bf16.mxu0 0
    %584 = vmatpush1.bf16.msra.mxu0 %v574
    %585 = vmatprep.subr.bf16.mxu0 0
    %586 = vmatpush1.bf16.msra.mxu0 %v573
    %587 = vmatprep.subr.bf16.mxu0 0
    %588 = vmatpush1.bf16.msra.mxu0 %v572
    %589 = vmatprep.subr.bf16.mxu0 0
    %590 = vmatpush1.bf16.msra.mxu0 %v571
    %591 = vmatprep.subr.bf16.mxu0 0
    %592 = vmatpush1.bf16.msra.mxu0 %v570
    %593 = vmatprep.subr.bf16.mxu0 0
    %594 = vmatpush1.bf16.msra.mxu0 %v569
    %595 = vmatprep.subr.bf16.mxu0 0
    %596 = vmatpush1.bf16.msra.mxu0 %v568
    %597 = vmatprep.subr.bf16.mxu0 0
    %598 = vmatpush1.bf16.msra.mxu0 %v567
    %599 = vmatprep.subr.bf16.mxu0 0
    %600 = vmatpush2.bf16.msra.mxu0 0
    %601 = vmatprep.subr.bf16.mxu0 0
    %602 = vmatpush2.bf16.msra.mxu0 0
    %603 = vmatprep.subr.bf16.mxu0 0
    %604 = vmatpush2.bf16.msra.mxu0 0
    %605 = vmatprep.subr.bf16.mxu0 0
    %606 = vmatpush2.bf16.msra.mxu0 0
    %607 = vmatprep.subr.bf16.mxu0 0
    %608 = vmatpush2.bf16.msra.mxu0 0
    %609 = vmatprep.subr.bf16.mxu0 0
    %610 = vmatpush2.bf16.msra.mxu0 0
    %611 = vmatprep.subr.bf16.mxu0 0
    %612 = vmatpush2.bf16.msra.mxu0 0
    %613 = vmatprep.subr.bf16.mxu0 0
    %614 = vmatpush2.bf16.msra.mxu0 0
    %615 = vmatprep.mubr.bf16.mxu0 0
    %616 = vmatmul.mubr.bf16.gmra.mxu0 %v511
    %v617 = vpop.f32.mrf.mxu0
    %v618 = vadd.f32 0.0, %v617
    %v619 = vpop.f32.mrf.mxu0
    %v620 = vpop.f32.mrf.mxu0
    %v621 = vadd.f32 0.0, %v620
    %v622 = vpop.f32.mrf.mxu0
    %623 = vmatprep.mubr.bf16.mxu0 0
    %624 = vmatmul.mubr.bf16.gmra.mxu0 %v512
    %v625 = vpop.f32.mrf.mxu0
    %v626 = vadd.f32 0.0, %v625
    %v627 = vpop.f32.mrf.mxu0
    %v628 = vpop.f32.mrf.mxu0
    %v629 = vadd.f32 0.0, %v628
    %v630 = vpop.f32.mrf.mxu0
    %631 = vmatprep.mubr.bf16.mxu0 0
    %632 = vmatmul.mubr.bf16.gmra.mxu0 %v513
    %v633 = vpop.f32.mrf.mxu0
    %v634 = vadd.f32 0.0, %v633
    %v635 = vpop.f32.mrf.mxu0
    %v636 = vpop.f32.mrf.mxu0
    %v637 = vadd.f32 0.0, %v636
    %v638 = vpop.f32.mrf.mxu0
    %639 = vmatprep.mubr.bf16.mxu0 0
    %640 = vmatmul.mubr.bf16.gmra.mxu0 %v514
    %v641 = vpop.f32.mrf.mxu0
    %v642 = vadd.f32 0.0, %v641
    %v643 = vpop.f32.mrf.mxu0
    %v644 = vpop.f32.mrf.mxu0
    %v645 = vadd.f32 0.0, %v644
    %v646 = vpop.f32.mrf.mxu0
    %647 = vmatprep.mubr.bf16.mxu0 0
    %648 = vmatmul.mubr.bf16.gmra.mxu0 %v515
    %v649 = vpop.f32.mrf.mxu0
    %v650 = vadd.f32 0.0, %v649
    %v651 = vpop.f32.mrf.mxu0
    %v652 = vpop.f32.mrf.mxu0
    %v653 = vadd.f32 0.0, %v652
    %v654 = vpop.f32.mrf.mxu0
    %655 = vmatprep.mubr.bf16.mxu0 0
    %656 = vmatmul.mubr.bf16.gmra.mxu0 %v516
    %v657 = vpop.f32.mrf.mxu0
    %v658 = vadd.f32 0.0, %v657
    %v659 = vpop.f32.mrf.mxu0
    %v660 = vpop.f32.mrf.mxu0
    %v661 = vadd.f32 0.0, %v660
    %v662 = vpop.f32.mrf.mxu0
    %663 = vmatprep.mubr.bf16.mxu0 0
    %664 = vmatmul.mubr.bf16.gmra.mxu0 %v517
    %v665 = vpop.f32.mrf.mxu0
    %v666 = vadd.f32 0.0, %v665
    %v667 = vpop.f32.mrf.mxu0
    %v668 = vpop.f32.mrf.mxu0
    %v669 = vadd.f32 0.0, %v668
    %v670 = vpop.f32.mrf.mxu0
    %671 = vmatprep.mubr.bf16.mxu0 0
    %672 = vmatmul.mubr.bf16.gmra.mxu0 %v518
    %v673 = vpop.f32.mrf.mxu0
    %v674 = vadd.f32 0.0, %v673
    %v675 = vpop.f32.mrf.mxu0
    %v676 = vpop.f32.mrf.mxu0
    %v677 = vadd.f32 0.0, %v676
    %v678 = vpop.f32.mrf.mxu0
    %679 = vdwg.mxu0
    %v680 = vpack.c.bf16 %v621, %v618
    %v681 = vpack.c.bf16 %v629, %v626
    %v682 = vpack.c.bf16 %v637, %v634
    %v683 = vpack.c.bf16 %v645, %v642
    %v684 = vpack.c.bf16 %v653, %v650
    %v685 = vpack.c.bf16 %v661, %v658
    %v686 = vpack.c.bf16 %v669, %v666
    %v687 = vpack.c.bf16 %v677, %v674
    %v688 = vld [vmem:[%s6] sm:$0x1]
    %v690 = vlaneseq
    %v691 = vshrl.u32 %v690, 7
    %v692 = vsub.s32 0, %v691
    %v693 = vrot.slane %v688, %v692
    %695 = vmatprep.subr.bf16.mxu0 0
    %696 = vmatpush1.bf16.msra.mxu0 %v687
    %697 = vmatprep.subr.bf16.mxu0 0
    %698 = vmatpush1.bf16.msra.mxu0 %v686
    %699 = vmatprep.subr.bf16.mxu0 0
    %700 = vmatpush1.bf16.msra.mxu0 %v685
    %701 = vmatprep.subr.bf16.mxu0 0
    %702 = vmatpush1.bf16.msra.mxu0 %v684
    %703 = vmatprep.subr.bf16.mxu0 0
    %704 = vmatpush1.bf16.msra.mxu0 %v683
    %705 = vmatprep.subr.bf16.mxu0 0
    %706 = vmatpush1.bf16.msra.mxu0 %v682
    %707 = vmatprep.subr.bf16.mxu0 0
    %708 = vmatpush1.bf16.msra.mxu0 %v681
    %709 = vmatprep.subr.bf16.mxu0 0
    %710 = vmatpush1.bf16.msra.mxu0 %v680
    %711 = vmatprep.subr.bf16.mxu0 0
    %712 = vmatpush2.bf16.msra.mxu0 0
    %713 = vmatprep.subr.bf16.mxu0 0
    %714 = vmatpush2.bf16.msra.mxu0 0
    %715 = vmatprep.subr.bf16.mxu0 0
    %716 = vmatpush2.bf16.msra.mxu0 0
    %717 = vmatprep.subr.bf16.mxu0 0
    %718 = vmatpush2.bf16.msra.mxu0 0
    %719 = vmatprep.subr.bf16.mxu0 0
    %720 = vmatpush2.bf16.msra.mxu0 0
    %721 = vmatprep.subr.bf16.mxu0 0
    %722 = vmatpush2.bf16.msra.mxu0 0
    %723 = vmatprep.subr.bf16.mxu0 0
    %724 = vmatpush2.bf16.msra.mxu0 0
    %725 = vmatprep.subr.bf16.mxu0 0
    %726 = vmatpush2.bf16.msra.mxu0 0
    %727 = vmatprep.mubr.bf16.mxu0 0
    %728 = vmatmul.mubr.bf16.gmra.mxu0 %v382
    %v729 = vpop.f32.mrf.mxu0
    %v730 = vadd.f32 %v693, %v729
    %v731 = vpop.f32.mrf.mxu0
    %v732 = vpop.f32.mrf.mxu0
    %v733 = vadd.f32 %v693, %v732
    %v734 = vpop.f32.mrf.mxu0
    %735 = vmatprep.mubr.bf16.mxu0 0
    %736 = vmatmul.mubr.bf16.gmra.mxu0 %v383
    %v737 = vpop.f32.mrf.mxu0
    %v738 = vadd.f32 %v693, %v737
    %v739 = vpop.f32.mrf.mxu0
    %v740 = vpop.f32.mrf.mxu0
    %v741 = vadd.f32 %v693, %v740
    %v742 = vpop.f32.mrf.mxu0
    %743 = vmatprep.mubr.bf16.mxu0 0
    %744 = vmatmul.mubr.bf16.gmra.mxu0 %v384
    %v745 = vpop.f32.mrf.mxu0
    %v746 = vadd.f32 %v693, %v745
    %v747 = vpop.f32.mrf.mxu0
    %v748 = vpop.f32.mrf.mxu0
    %v749 = vadd.f32 %v693, %v748
    %v750 = vpop.f32.mrf.mxu0
    %751 = vmatprep.mubr.bf16.mxu0 0
    %752 = vmatmul.mubr.bf16.gmra.mxu0 %v385
    %v753 = vpop.f32.mrf.mxu0
    %v754 = vadd.f32 %v693, %v753
    %v755 = vpop.f32.mrf.mxu0
    %v756 = vpop.f32.mrf.mxu0
    %v757 = vadd.f32 %v693, %v756
    %v758 = vpop.f32.mrf.mxu0
    %759 = vmatprep.mubr.bf16.mxu0 0
    %760 = vmatmul.mubr.bf16.gmra.mxu0 %v386
    %v761 = vpop.f32.mrf.mxu0
    %v762 = vadd.f32 %v693, %v761
    %v763 = vpop.f32.mrf.mxu0
    %v764 = vpop.f32.mrf.mxu0
    %v765 = vadd.f32 %v693, %v764
    %v766 = vpop.f32.mrf.mxu0
    %767 = vmatprep.mubr.bf16.mxu0 0
    %768 = vmatmul.mubr.bf16.gmra.mxu0 %v387
    %v769 = vpop.f32.mrf.mxu0
    %v770 = vadd.f32 %v693, %v769
    %v771 = vpop.f32.mrf.mxu0
    %v772 = vpop.f32.mrf.mxu0
    %v773 = vadd.f32 %v693, %v772
    %v774 = vpop.f32.mrf.mxu0
    %775 = vmatprep.mubr.bf16.mxu0 0
    %776 = vmatmul.mubr.bf16.gmra.mxu0 %v388
    %v777 = vpop.f32.mrf.mxu0
    %v778 = vadd.f32 %v693, %v777
    %v779 = vpop.f32.mrf.mxu0
    %v780 = vpop.f32.mrf.mxu0
    %v781 = vadd.f32 %v693, %v780
    %v782 = vpop.f32.mrf.mxu0
    %783 = vmatprep.mubr.bf16.mxu0 0
    %784 = vmatmul.mubr.bf16.gmra.mxu0 %v389
    %v785 = vpop.f32.mrf.mxu0
    %v786 = vadd.f32 %v693, %v785
    %v787 = vpop.f32.mrf.mxu0
    %v788 = vpop.f32.mrf.mxu0
    %v789 = vadd.f32 %v693, %v788
    %v790 = vpop.f32.mrf.mxu0
    %791 = vdwg.mxu0
    %v792 = vmax.f32 %v730, 0.0
    %v793 = vmax.f32 %v733, 0.0
    %v794 = vmax.f32 %v738, 0.0
    %v795 = vmax.f32 %v741, 0.0
    %v796 = vmax.f32 %v746, 0.0
    %v797 = vmax.f32 %v749, 0.0
    %v798 = vmax.f32 %v754, 0.0
    %v799 = vmax.f32 %v757, 0.0
    %v800 = vmax.f32 %v762, 0.0
    %v801 = vmax.f32 %v765, 0.0
    %v802 = vmax.f32 %v770, 0.0
    %v803 = vmax.f32 %v773, 0.0
    %v804 = vmax.f32 %v778, 0.0
    %v805 = vmax.f32 %v781, 0.0
    %v806 = vmax.f32 %v786, 0.0
    %v807 = vmax.f32 %v789, 0.0
    %v808 = vpack.c.bf16 %v793, %v792
    %v809 = vpack.c.bf16 %v795, %v794
    %v810 = vpack.c.bf16 %v797, %v796
    %v811 = vpack.c.bf16 %v799, %v798
    %v812 = vpack.c.bf16 %v801, %v800
    %v813 = vpack.c.bf16 %v803, %v802
    %v814 = vpack.c.bf16 %v805, %v804
    %v815 = vpack.c.bf16 %v807, %v806
    %v816 = vld [vmem:[#allocation6] sm:$0xf]
    %v817 = vld [vmem:[#allocation6 + $0x4] sm:$0xf]
    %v818 = vld [vmem:[#allocation6 + $0x8] sm:$0xf]
    %v819 = vld [vmem:[#allocation6 + $0xc] sm:$0xf]
    %v820 = vld [vmem:[#allocation6 + $0x10] sm:$0xf]
    %v821 = vld [vmem:[#allocation6 + $0x14] sm:$0xf]
    %v822 = vld [vmem:[#allocation6 + $0x18] sm:$0xf]
    %v823 = vld [vmem:[#allocation6 + $0x1c] sm:$0xf]
    %v824 = vld [vmem:[#allocation6 + $0x20] sm:$0xf]
    %v825 = vld [vmem:[#allocation6 + $0x24] sm:$0xf]
    %v826 = vld [vmem:[#allocation6 + $0x28] sm:$0xf]
    %v827 = vld [vmem:[#allocation6 + $0x2c] sm:$0xf]
    %v828 = vld [vmem:[#allocation6 + $0x30] sm:$0xf]
    %v829 = vld [vmem:[#allocation6 + $0x34] sm:$0xf]
    %v830 = vld [vmem:[#allocation6 + $0x38] sm:$0xf]
    %v831 = vld [vmem:[#allocation6 + $0x3c] sm:$0xf]
    %v848 = vunpack.c.l.b16 %v816
    %v849 = vunpack.c.l.b16 %v817
    %v850 = vunpack.c.l.b16 %v818
    %v851 = vunpack.c.l.b16 %v819
    %v852 = vunpack.c.l.b16 %v820
    %v853 = vunpack.c.l.b16 %v821
    %v854 = vunpack.c.l.b16 %v822
    %v855 = vunpack.c.l.b16 %v823
    %v856 = vunpack.c.l.b16 %v824
    %v857 = vunpack.c.l.b16 %v825
    %v858 = vunpack.c.l.b16 %v826
    %v859 = vunpack.c.l.b16 %v827
    %v860 = vunpack.c.l.b16 %v828
    %v861 = vunpack.c.l.b16 %v829
    %v862 = vunpack.c.l.b16 %v830
    %v863 = vunpack.c.l.b16 %v831
    %v864 = vpack.c.b16 %v849, %v848
    %v865 = vpack.c.b16 %v851, %v850
    %v866 = vpack.c.b16 %v853, %v852
    %v867 = vpack.c.b16 %v855, %v854
    %v868 = vpack.c.b16 %v857, %v856
    %v869 = vpack.c.b16 %v859, %v858
    %v870 = vpack.c.b16 %v861, %v860
    %v871 = vpack.c.b16 %v863, %v862
    %880 = vmatprep.subr.bf16.mxu0 0
    %881 = vmatpush1.bf16.msra.mxu0 %v871
    %882 = vmatprep.subr.bf16.mxu0 0
    %883 = vmatpush1.bf16.msra.mxu0 %v870
    %884 = vmatprep.subr.bf16.mxu0 0
    %885 = vmatpush1.bf16.msra.mxu0 %v869
    %886 = vmatprep.subr.bf16.mxu0 0
    %887 = vmatpush1.bf16.msra.mxu0 %v868
    %888 = vmatprep.subr.bf16.mxu0 0
    %889 = vmatpush1.bf16.msra.mxu0 %v867
    %890 = vmatprep.subr.bf16.mxu0 0
    %891 = vmatpush1.bf16.msra.mxu0 %v866
    %892 = vmatprep.subr.bf16.mxu0 0
    %893 = vmatpush1.bf16.msra.mxu0 %v865
    %894 = vmatprep.subr.bf16.mxu0 0
    %895 = vmatpush1.bf16.msra.mxu0 %v864
    %896 = vmatprep.subr.bf16.mxu0 0
    %897 = vmatpush2.bf16.msra.mxu0 0
    %898 = vmatprep.subr.bf16.mxu0 0
    %899 = vmatpush2.bf16.msra.mxu0 0
    %900 = vmatprep.subr.bf16.mxu0 0
    %901 = vmatpush2.bf16.msra.mxu0 0
    %902 = vmatprep.subr.bf16.mxu0 0
    %903 = vmatpush2.bf16.msra.mxu0 0
    %904 = vmatprep.subr.bf16.mxu0 0
    %905 = vmatpush2.bf16.msra.mxu0 0
    %906 = vmatprep.subr.bf16.mxu0 0
    %907 = vmatpush2.bf16.msra.mxu0 0
    %908 = vmatprep.subr.bf16.mxu0 0
    %909 = vmatpush2.bf16.msra.mxu0 0
    %910 = vmatprep.subr.bf16.mxu0 0
    %911 = vmatpush2.bf16.msra.mxu0 0
    %912 = vmatprep.mubr.bf16.mxu0 0
    %913 = vmatmul.mubr.bf16.gmra.mxu0 %v808
    %v914 = vpop.f32.mrf.mxu0
    %v915 = vadd.f32 0.0, %v914
    %v916 = vpop.f32.mrf.mxu0
    %v917 = vpop.f32.mrf.mxu0
    %v918 = vadd.f32 0.0, %v917
    %v919 = vpop.f32.mrf.mxu0
    %920 = vmatprep.mubr.bf16.mxu0 0
    %921 = vmatmul.mubr.bf16.gmra.mxu0 %v809
    %v922 = vpop.f32.mrf.mxu0
    %v923 = vadd.f32 0.0, %v922
    %v924 = vpop.f32.mrf.mxu0
    %v925 = vpop.f32.mrf.mxu0
    %v926 = vadd.f32 0.0, %v925
    %v927 = vpop.f32.mrf.mxu0
    %928 = vmatprep.mubr.bf16.mxu0 0
    %929 = vmatmul.mubr.bf16.gmra.mxu0 %v810
    %v930 = vpop.f32.mrf.mxu0
    %v931 = vadd.f32 0.0, %v930
    %v932 = vpop.f32.mrf.mxu0
    %v933 = vpop.f32.mrf.mxu0
    %v934 = vadd.f32 0.0, %v933
    %v935 = vpop.f32.mrf.mxu0
    %936 = vmatprep.mubr.bf16.mxu0 0
    %937 = vmatmul.mubr.bf16.gmra.mxu0 %v811
    %v938 = vpop.f32.mrf.mxu0
    %v939 = vadd.f32 0.0, %v938
    %v940 = vpop.f32.mrf.mxu0
    %v941 = vpop.f32.mrf.mxu0
    %v942 = vadd.f32 0.0, %v941
    %v943 = vpop.f32.mrf.mxu0
    %944 = vmatprep.mubr.bf16.mxu0 0
    %945 = vmatmul.mubr.bf16.gmra.mxu0 %v812
    %v946 = vpop.f32.mrf.mxu0
    %v947 = vadd.f32 0.0, %v946
    %v948 = vpop.f32.mrf.mxu0
    %v949 = vpop.f32.mrf.mxu0
    %v950 = vadd.f32 0.0, %v949
    %v951 = vpop.f32.mrf.mxu0
    %952 = vmatprep.mubr.bf16.mxu0 0
    %953 = vmatmul.mubr.bf16.gmra.mxu0 %v813
    %v954 = vpop.f32.mrf.mxu0
    %v955 = vadd.f32 0.0, %v954
    %v956 = vpop.f32.mrf.mxu0
    %v957 = vpop.f32.mrf.mxu0
    %v958 = vadd.f32 0.0, %v957
    %v959 = vpop.f32.mrf.mxu0
    %960 = vmatprep.mubr.bf16.mxu0 0
    %961 = vmatmul.mubr.bf16.gmra.mxu0 %v814
    %v962 = vpop.f32.mrf.mxu0
    %v963 = vadd.f32 0.0, %v962
    %v964 = vpop.f32.mrf.mxu0
    %v965 = vpop.f32.mrf.mxu0
    %v966 = vadd.f32 0.0, %v965
    %v967 = vpop.f32.mrf.mxu0
    %968 = vmatprep.mubr.bf16.mxu0 0
    %969 = vmatmul.mubr.bf16.gmra.mxu0 %v815
    %v970 = vpop.f32.mrf.mxu0
    %v971 = vadd.f32 0.0, %v970
    %v972 = vpop.f32.mrf.mxu0
    %v973 = vpop.f32.mrf.mxu0
    %v974 = vadd.f32 0.0, %v973
    %v975 = vpop.f32.mrf.mxu0
    %976 = vdwg.mxu0
    %v977 = vpack.c.bf16 %v918, %v915
    %v978 = vpack.c.bf16 %v926, %v923
    %v979 = vpack.c.bf16 %v934, %v931
    %v980 = vpack.c.bf16 %v942, %v939
    %v981 = vpack.c.bf16 %v950, %v947
    %v982 = vpack.c.bf16 %v958, %v955
    %v983 = vpack.c.bf16 %v966, %v963
    %v984 = vpack.c.bf16 %v974, %v971
    %v985 = vld [vmem:[%s8] sm:$0x1]
    %v987 = vlaneseq
    %v988 = vshrl.u32 %v987, 7
    %v989 = vsub.s32 0, %v988
    %v990 = vrot.slane %v985, %v989
    %992 = vmatprep.subr.bf16.mxu0 0
    %993 = vmatpush1.bf16.msra.mxu0 %v984
    %994 = vmatprep.subr.bf16.mxu0 0
    %995 = vmatpush1.bf16.msra.mxu0 %v983
    %996 = vmatprep.subr.bf16.mxu0 0
    %997 = vmatpush1.bf16.msra.mxu0 %v982
    %998 = vmatprep.subr.bf16.mxu0 0
    %999 = vmatpush1.bf16.msra.mxu0 %v981
    %1000 = vmatprep.subr.bf16.mxu0 0
    %1001 = vmatpush1.bf16.msra.mxu0 %v980
    %1002 = vmatprep.subr.bf16.mxu0 0
    %1003 = vmatpush1.bf16.msra.mxu0 %v979
    %1004 = vmatprep.subr.bf16.mxu0 0
    %1005 = vmatpush1.bf16.msra.mxu0 %v978
    %1006 = vmatprep.subr.bf16.mxu0 0
    %1007 = vmatpush1.bf16.msra.mxu0 %v977
    %1008 = vmatprep.subr.bf16.mxu0 0
    %1009 = vmatpush2.bf16.msra.mxu0 0
    %1010 = vmatprep.subr.bf16.mxu0 0
    %1011 = vmatpush2.bf16.msra.mxu0 0
    %1012 = vmatprep.subr.bf16.mxu0 0
    %1013 = vmatpush2.bf16.msra.mxu0 0
    %1014 = vmatprep.subr.bf16.mxu0 0
    %1015 = vmatpush2.bf16.msra.mxu0 0
    %1016 = vmatprep.subr.bf16.mxu0 0
    %1017 = vmatpush2.bf16.msra.mxu0 0
    %1018 = vmatprep.subr.bf16.mxu0 0
    %1019 = vmatpush2.bf16.msra.mxu0 0
    %1020 = vmatprep.subr.bf16.mxu0 0
    %1021 = vmatpush2.bf16.msra.mxu0 0
    %1022 = vmatprep.subr.bf16.mxu0 0
    %1023 = vmatpush2.bf16.msra.mxu0 0
    %1024 = vmatprep.mubr.bf16.mxu0 0
    %1025 = vmatmul.mubr.bf16.gmra.mxu0 %v382
    %v1026 = vpop.f32.mrf.mxu0
    %v1027 = vadd.f32 %v990, %v1026
    %v1028 = vpop.f32.mrf.mxu0
    %v1029 = vpop.f32.mrf.mxu0
    %v1030 = vadd.f32 %v990, %v1029
    %v1031 = vpop.f32.mrf.mxu0
    %1032 = vmatprep.mubr.bf16.mxu0 0
    %1033 = vmatmul.mubr.bf16.gmra.mxu0 %v383
    %v1034 = vpop.f32.mrf.mxu0
    %v1035 = vadd.f32 %v990, %v1034
    %v1036 = vpop.f32.mrf.mxu0
    %v1037 = vpop.f32.mrf.mxu0
    %v1038 = vadd.f32 %v990, %v1037
    %v1039 = vpop.f32.mrf.mxu0
    %1040 = vmatprep.mubr.bf16.mxu0 0
    %1041 = vmatmul.mubr.bf16.gmra.mxu0 %v384
    %v1042 = vpop.f32.mrf.mxu0
    %v1043 = vadd.f32 %v990, %v1042
    %v1044 = vpop.f32.mrf.mxu0
    %v1045 = vpop.f32.mrf.mxu0
    %v1046 = vadd.f32 %v990, %v1045
    %v1047 = vpop.f32.mrf.mxu0
    %1048 = vmatprep.mubr.bf16.mxu0 0
    %1049 = vmatmul.mubr.bf16.gmra.mxu0 %v385
    %v1050 = vpop.f32.mrf.mxu0
    %v1051 = vadd.f32 %v990, %v1050
    %v1052 = vpop.f32.mrf.mxu0
    %v1053 = vpop.f32.mrf.mxu0
    %v1054 = vadd.f32 %v990, %v1053
    %v1055 = vpop.f32.mrf.mxu0
    %1056 = vmatprep.mubr.bf16.mxu0 0
    %1057 = vmatmul.mubr.bf16.gmra.mxu0 %v386
    %v1058 = vpop.f32.mrf.mxu0
    %v1059 = vadd.f32 %v990, %v1058
    %v1060 = vpop.f32.mrf.mxu0
    %v1061 = vpop.f32.mrf.mxu0
    %v1062 = vadd.f32 %v990, %v1061
    %v1063 = vpop.f32.mrf.mxu0
    %1064 = vmatprep.mubr.bf16.mxu0 0
    %1065 = vmatmul.mubr.bf16.gmra.mxu0 %v387
    %v1066 = vpop.f32.mrf.mxu0
    %v1067 = vadd.f32 %v990, %v1066
    %v1068 = vpop.f32.mrf.mxu0
    %v1069 = vpop.f32.mrf.mxu0
    %v1070 = vadd.f32 %v990, %v1069
    %v1071 = vpop.f32.mrf.mxu0
    %1072 = vmatprep.mubr.bf16.mxu0 0
    %1073 = vmatmul.mubr.bf16.gmra.mxu0 %v388
    %v1074 = vpop.f32.mrf.mxu0
    %v1075 = vadd.f32 %v990, %v1074
    %v1076 = vpop.f32.mrf.mxu0
    %v1077 = vpop.f32.mrf.mxu0
    %v1078 = vadd.f32 %v990, %v1077
    %v1079 = vpop.f32.mrf.mxu0
    %1080 = vmatprep.mubr.bf16.mxu0 0
    %1081 = vmatmul.mubr.bf16.gmra.mxu0 %v389
    %v1082 = vpop.f32.mrf.mxu0
    %v1083 = vadd.f32 %v990, %v1082
    %v1084 = vpop.f32.mrf.mxu0
    %v1085 = vpop.f32.mrf.mxu0
    %v1086 = vadd.f32 %v990, %v1085
    %v1087 = vpop.f32.mrf.mxu0
    %1088 = vdwg.mxu0
    %v1089 = vld [vmem:[%s1] sm:$0xf]
    %v1090 = vld [vmem:[%s1 + $0x4] sm:$0xf]
    %v1091 = vpack.c.bf16 %v1030, %v1027
    %v1092 = vpack.c.bf16 %v1038, %v1035
    %v1093 = vpack.c.bf16 %v1046, %v1043
    %v1094 = vpack.c.bf16 %v1054, %v1051
    %v1095 = vpack.c.bf16 %v1062, %v1059
    %v1096 = vpack.c.bf16 %v1070, %v1067
    %v1097 = vpack.c.bf16 %v1078, %v1075
    %v1098 = vpack.c.bf16 %v1086, %v1083
    %v1101 = vunpack.c.l.b16 %v1089
    %v1102 = vunpack.c.l.b16 %v1090
    %v1103 = vpack.c.b16 %v1102, %v1101
    %1105 = vmatprep.subr.bf16.mxu0 0
    %1106 = vmatpush1.bf16.msra.mxu0 %v1098
    %1107 = vmatprep.subr.bf16.mxu0 0
    %1108 = vmatpush1.bf16.msra.mxu0 %v1097
    %1109 = vmatprep.subr.bf16.mxu0 0
    %1110 = vmatpush1.bf16.msra.mxu0 %v1096
    %1111 = vmatprep.subr.bf16.mxu0 0
    %1112 = vmatpush1.bf16.msra.mxu0 %v1095
    %1113 = vmatprep.subr.bf16.mxu0 0
    %1114 = vmatpush1.bf16.msra.mxu0 %v1094
    %1115 = vmatprep.subr.bf16.mxu0 0
    %1116 = vmatpush1.bf16.msra.mxu0 %v1093
    %1117 = vmatprep.subr.bf16.mxu0 0
    %1118 = vmatpush1.bf16.msra.mxu0 %v1092
    %1119 = vmatprep.subr.bf16.mxu0 0
    %1120 = vmatpush1.bf16.msra.mxu0 %v1091
    %1121 = vmatprep.subr.bf16.mxu0 0
    %1122 = vmatpush2.bf16.msra.mxu0 0
    %1123 = vmatprep.subr.bf16.mxu0 0
    %1124 = vmatpush2.bf16.msra.mxu0 0
    %1125 = vmatprep.subr.bf16.mxu0 0
    %1126 = vmatpush2.bf16.msra.mxu0 0
    %1127 = vmatprep.subr.bf16.mxu0 0
    %1128 = vmatpush2.bf16.msra.mxu0 0
    %1129 = vmatprep.subr.bf16.mxu0 0
    %1130 = vmatpush2.bf16.msra.mxu0 0
    %1131 = vmatprep.subr.bf16.mxu0 0
    %1132 = vmatpush2.bf16.msra.mxu0 0
    %1133 = vmatprep.subr.bf16.mxu0 0
    %1134 = vmatpush2.bf16.msra.mxu0 0
    %1135 = vmatprep.subr.bf16.mxu0 0
    %1136 = vmatpush2.bf16.msra.mxu0 0
    %1137 = vmatprep.mubr.bf16.mxu0 0
    %1138 = vmatmul.mubr.bf16.gmra.mxu0 %v1103
    %v1139 = vpop.f32.mrf.mxu0
    %v1140 = vadd.f32 0.0, %v1139
    %v1141 = vpop.f32.mrf.mxu0
    %v1142 = vpop.f32.mrf.mxu0
    %v1143 = vadd.f32 0.0, %v1142
    %v1144 = vpop.f32.mrf.mxu0
    %1145 = vdwg.mxu0
    %v1146 = vpack.c.bf16 %v1143, %v1140
    %v1147 = vld [vmem:[#allocation7] sm:$0xf]
    %v1148 = vld [vmem:[#allocation7 + $0x4] sm:$0xf]
    %v1149 = vld [vmem:[#allocation7 + $0x8] sm:$0xf]
    %v1150 = vld [vmem:[#allocation7 + $0xc] sm:$0xf]
    %v1151 = vld [vmem:[#allocation7 + $0x10] sm:$0xf]
    %v1152 = vld [vmem:[#allocation7 + $0x14] sm:$0xf]
    %v1153 = vld [vmem:[#allocation7 + $0x18] sm:$0xf]
    %v1154 = vld [vmem:[#allocation7 + $0x1c] sm:$0xf]
    %v1155 = vld [vmem:[#allocation7 + $0x20] sm:$0xf]
    %v1156 = vld [vmem:[#allocation7 + $0x24] sm:$0xf]
    %v1157 = vld [vmem:[#allocation7 + $0x28] sm:$0xf]
    %v1158 = vld [vmem:[#allocation7 + $0x2c] sm:$0xf]
    %v1159 = vld [vmem:[#allocation7 + $0x30] sm:$0xf]
    %v1160 = vld [vmem:[#allocation7 + $0x34] sm:$0xf]
    %v1161 = vld [vmem:[#allocation7 + $0x38] sm:$0xf]
    %v1162 = vld [vmem:[#allocation7 + $0x3c] sm:$0xf]
    %v1163 = vld [vmem:[%s10] sm:$0x1]
    %v1165 = vlaneseq
    %v1166 = vshrl.u32 %v1165, 7
    %v1167 = vsub.s32 0, %v1166
    %v1168 = vrot.slane %v1163, %v1167
    %v1186 = vunpack.c.l.b16 %v1147
    %v1187 = vunpack.c.l.b16 %v1148
    %v1188 = vunpack.c.l.b16 %v1149
    %v1189 = vunpack.c.l.b16 %v1150
    %v1190 = vunpack.c.l.b16 %v1151
    %v1191 = vunpack.c.l.b16 %v1152
    %v1192 = vunpack.c.l.b16 %v1153
    %v1193 = vunpack.c.l.b16 %v1154
    %v1194 = vunpack.c.l.b16 %v1155
    %v1195 = vunpack.c.l.b16 %v1156
    %v1196 = vunpack.c.l.b16 %v1157
    %v1197 = vunpack.c.l.b16 %v1158
    %v1198 = vunpack.c.l.b16 %v1159
    %v1199 = vunpack.c.l.b16 %v1160
    %v1200 = vunpack.c.l.b16 %v1161
    %v1201 = vunpack.c.l.b16 %v1162
    %v1202 = vpack.c.b16 %v1187, %v1186
    %v1203 = vpack.c.b16 %v1189, %v1188
    %v1204 = vpack.c.b16 %v1191, %v1190
    %v1205 = vpack.c.b16 %v1193, %v1192
    %v1206 = vpack.c.b16 %v1195, %v1194
    %v1207 = vpack.c.b16 %v1197, %v1196
    %v1208 = vpack.c.b16 %v1199, %v1198
    %v1209 = vpack.c.b16 %v1201, %v1200
    %1218 = vmatprep.subr.bf16.mxu0 0
    %1219 = vmatpush1.bf16.msra.mxu0 %v1209
    %1220 = vmatprep.subr.bf16.mxu0 0
    %1221 = vmatpush1.bf16.msra.mxu0 %v1208
    %1222 = vmatprep.subr.bf16.mxu0 0
    %1223 = vmatpush1.bf16.msra.mxu0 %v1207
    %1224 = vmatprep.subr.bf16.mxu0 0
    %1225 = vmatpush1.bf16.msra.mxu0 %v1206
    %1226 = vmatprep.subr.bf16.mxu0 0
    %1227 = vmatpush1.bf16.msra.mxu0 %v1205
    %1228 = vmatprep.subr.bf16.mxu0 0
    %1229 = vmatpush1.bf16.msra.mxu0 %v1204
    %1230 = vmatprep.subr.bf16.mxu0 0
    %1231 = vmatpush1.bf16.msra.mxu0 %v1203
    %1232 = vmatprep.subr.bf16.mxu0 0
    %1233 = vmatpush1.bf16.msra.mxu0 %v1202
    %1234 = vmatprep.subr.bf16.mxu0 0
    %1235 = vmatpush2.bf16.msra.mxu0 0
    %1236 = vmatprep.subr.bf16.mxu0 0
    %1237 = vmatpush2.bf16.msra.mxu0 0
    %1238 = vmatprep.subr.bf16.mxu0 0
    %1239 = vmatpush2.bf16.msra.mxu0 0
    %1240 = vmatprep.subr.bf16.mxu0 0
    %1241 = vmatpush2.bf16.msra.mxu0 0
    %1242 = vmatprep.subr.bf16.mxu0 0
    %1243 = vmatpush2.bf16.msra.mxu0 0
    %1244 = vmatprep.subr.bf16.mxu0 0
    %1245 = vmatpush2.bf16.msra.mxu0 0
    %1246 = vmatprep.subr.bf16.mxu0 0
    %1247 = vmatpush2.bf16.msra.mxu0 0
    %1248 = vmatprep.subr.bf16.mxu0 0
    %1249 = vmatpush2.bf16.msra.mxu0 0
    %1250 = vmatprep.mubr.bf16.mxu0 0
    %1251 = vmatmul.mubr.bf16.gmra.mxu0 %v1146
    %v1252 = vpop.f32.mrf.mxu0
    %v1253 = vadd.f32 %v1168, %v1252
    %v1254 = vpop.f32.mrf.mxu0
    %v1255 = vpop.f32.mrf.mxu0
    %v1256 = vadd.f32 %v1168, %v1255
    %v1257 = vpop.f32.mrf.mxu0
    %1258 = vdwg.mxu0
    %1259 = vst [vmem:[%s11] sm:$0xff] %v1253
    %1260 = vst [vmem:[%s11 + $0x8] sm:$0xff] %v1256
    // Predicated region
    $region62: #{gcn_forward.1} parent=1 // pred_check
      _
    $region63: #{gcn_forward.1} parent=1 // pred_check_branch
      %1262 = sbr.rel (0) target = $region65
    $region64: #{gcn_forward.1} parent=1 // pred_region
      _
    $region65: #{gcn_forward.1} parent=1 // pred_fallthru
      _
    // Predicated region
    $region66: #{gcn_forward.1} parent=1 // pred_check
      _
    $region67: #{gcn_forward.1} parent=1 // pred_check_branch
      %1264 = sbr.rel (0) target = $region69
    $region68: #{gcn_forward.1} parent=1 // pred_region
      _
    $region69: #{gcn_forward.1} parent=1 // pred_fallthru
      _
    %1265 = vsyncpa [#allocation3], 1
    %1266 = vsyncpa [#allocation5], 1
    %1267 = vsyncpa [#allocation8], 1

</llo_original>
